<compile_context>
chip_gen: v7x
topology: tpu7x:2x2x1
jax: 0.10.0
libtpu: 0.0.40
codegen_flags: <defaults>
</compile_context>

<pallas_src>
import jax
import jax.numpy as jnp
from jax.experimental import pallas as pl
from jax.experimental.pallas import tpu as pltpu


def _group_all_concat_kernel(xyz_t_ref, feat_ref, out_ref):
    # xyz_t_ref: (1, 3,   TN)   transposed xyz tile (lane-dense)
    # feat_ref : (1, C,   TN)   feature tile
    # out_ref  : (1, C+3, TN)   concatenated [features ; xyz^T]
    # Two direct stores into disjoint channel-row ranges of the output block;
    # avoids building a (C+3, TN) concat intermediate in VMEM.
    C = feat_ref.shape[1]
    out_ref[:, :C, :] = feat_ref[...]
    out_ref[:, C:, :] = xyz_t_ref[...]


def _choose_tile_n(N, C, itemsize):
    """Pick a lane-dense N tile (multiple of 128) that keeps VMEM to a few MiB."""
    # Live VMEM per grid step ~ 2 buffers * (C + 3 + (C+3)) * TN * itemsize
    #                         = 4 * (C+3) * TN * itemsize.
    budget_bytes = 8 << 20  # ~8 MiB; well under every chip's scoped VMEM default
    tn = budget_bytes // max(1, 4 * (C + 3) * itemsize)
    tn = max(128, min(8192, (tn // 128) * 128))
    if tn >= N:
        # Single full-extent tile along N (also covers N not a multiple of 128).
        return N
    return tn


def group_all(xyz, features=None, use_xyz=True):
    """Pallas implementation of pointnet2 GroupAll.forward.

    xyz      : (B, N, 3)
    features : (B, C, N) or None
    returns  : (B, C+3, 1, N) if features is not None and use_xyz
               (B, C,   1, N) if features is not None and not use_xyz
               (B, 3,   1, N) if features is None
    """
    B, N, _ = xyz.shape

    # Hoist the tiny (B, N, 3) -> (B, 3, N) transpose out of the kernel: xyz is
    # only B*N*3 elements and a (N,3) in-kernel transpose is lane-sparse/XLU-bound.
    xyz_t = jnp.swapaxes(xyz, 1, 2)  # (B, 3, N)

    if features is None:
        # Pure layout op once the transpose is hoisted; nothing to put in a kernel.
        return xyz_t[:, :, None, :]

    C = features.shape[1]

    if not use_xyz:
        # Pure unsqueeze(2); no compute.
        return features[:, :, None, :]

    out_dtype = features.dtype
    xyz_t = xyz_t.astype(out_dtype)
    itemsize = jnp.dtype(out_dtype).itemsize
    out_bytes = B * (C + 3) * N * itemsize

    # Small-input fallback: kernel launch + per-step overhead dominates; let XLA fuse.
    if N < 128 or out_bytes < (64 << 10):
        return jnp.concatenate([features, xyz_t], axis=1)[:, :, None, :]

    tn = _choose_tile_n(N, C, itemsize)
    n_tiles = pl.cdiv(N, tn)

    cost = pl.CostEstimate(
        flops=0,
        transcendentals=0,
        bytes_accessed=(B * C * N + B * 3 * N + B * (C + 3) * N) * itemsize,
    )

    out = pl.pallas_call(
        _group_all_concat_kernel,
        out_shape=jax.ShapeDtypeStruct((B, C + 3, N), out_dtype),
        grid=(B, n_tiles),
        in_specs=[
            pl.BlockSpec((1, 3, tn), lambda b, n: (b, 0, n)),
            pl.BlockSpec((1, C, tn), lambda b, n: (b, 0, n)),
        ],
        out_specs=pl.BlockSpec((1, C + 3, tn), lambda b, n: (b, 0, n)),
        compiler_params=pltpu.CompilerParams(
            dimension_semantics=("parallel", "parallel")),
        cost_estimate=cost,
    )(xyz_t, features)

    # trailing unsqueeze(2) is a free reshape
    return out[:, :, None, :]


def _reference(xyz, features=None, use_xyz=True):
    grouped_xyz = jnp.transpose(xyz, (0, 2, 1))[:, :, None, :]  # (B, 3, 1, N)
    if features is None:
        return grouped_xyz
    grouped_features = features[:, :, None, :]                  # (B, C, 1, N)
    if use_xyz:
        return jnp.concatenate([grouped_features, grouped_xyz], axis=1)
    return grouped_features


if __name__ == "__main__":
    # GroupAll has no learnable parameters; just build deterministic inputs.
    key = jax.random.PRNGKey(0)
    k_xyz, k_feat, k_new = jax.random.split(key, 3)

    # Shape with N >= 128 so the tiled Pallas path is exercised (still small).
    B, C, N = 2, 16, 512
    xyz = jax.random.normal(k_xyz, (B, N, 3), dtype=jnp.float32)
    new_xyz = jax.random.normal(k_new, (B, 1, 3), dtype=jnp.float32)  # ignored
    features = jax.random.normal(k_feat, (B, C, N), dtype=jnp.float32)

    out = jax.block_until_ready(group_all(xyz, features, use_xyz=True))
    expected = _reference(xyz, features, use_xyz=True)
    assert out.shape == (B, C + 3, 1, N), out.shape
    assert out.dtype == expected.dtype
    assert jnp.allclose(out, expected), "mismatch vs reference (Pallas path)"

    # Channel count not a multiple of 8 -> exercises the sublane-offset xyz store.
    Bm, Cm, Nm = 2, 13, 384
    xyz_m = jax.random.normal(k_xyz, (Bm, Nm, 3), dtype=jnp.float32)
    feat_m = jax.random.normal(k_feat, (Bm, Cm, Nm), dtype=jnp.float32)
    out_m = jax.block_until_ready(group_all(xyz_m, feat_m, use_xyz=True))
    assert out_m.shape == (Bm, Cm + 3, 1, Nm)
    assert jnp.allclose(out_m, _reference(xyz_m, feat_m, use_xyz=True))

    # Tiny shapes take the XLA fallback path (kernel launch not worth it there).
    Bs, Cs, Ns = 2, 4, 16
    xyz_s = jax.random.normal(k_xyz, (Bs, Ns, 3), dtype=jnp.float32)
    feat_s = jax.random.normal(k_feat, (Bs, Cs, Ns), dtype=jnp.float32)
    out_s = jax.block_until_ready(group_all(xyz_s, feat_s, use_xyz=True))
    assert out_s.shape == (Bs, Cs + 3, 1, Ns)
    assert jnp.allclose(out_s, _reference(xyz_s, feat_s, use_xyz=True))

    # features=None and use_xyz=False branches (pure layout, handled in JAX).
    out_xyz_only = jax.block_until_ready(group_all(xyz, None))
    assert out_xyz_only.shape == (B, 3, 1, N)
    assert jnp.allclose(out_xyz_only, _reference(xyz, None))

    out_no_xyz = jax.block_until_ready(group_all(xyz, features, use_xyz=False))
    assert out_no_xyz.shape == (B, C, 1, N)
    assert jnp.allclose(out_no_xyz, _reference(xyz, features, use_xyz=False))

    print("KERNEL_OK")
</pallas_src>

<mosaic_0001>
module attributes {stable_mosaic.version = 11 : i64} {
  func.func @_group_all_concat_kernel(%arg0: i32, %arg1: i32, %arg2: memref<1x3x512xf32, #tpu.memory_space<vmem>>, %arg3: memref<1x16x512xf32, #tpu.memory_space<vmem>>, %arg4: memref<1x19x512xf32, #tpu.memory_space<vmem>>) attributes {dimension_semantics = [#tpu.dimension_semantics<parallel>, #tpu.dimension_semantics<parallel>], iteration_bounds = array<i64: 2, 1>, scalar_prefetch = 0 : i64, scratch_operands = 0 : i64, tpu.core_type = #tpu.core_type<tc>, window_params = [{transform_indices = @transform_0, window_bounds = array<i64: 1, 3, 512>}, {transform_indices = @transform_1, window_bounds = array<i64: 1, 16, 512>}, {transform_indices = @transform_2, window_bounds = array<i64: 1, 19, 512>}]} {
    %c0 = arith.constant 0 : index
    %c0_0 = arith.constant 0 : index
    %c0_1 = arith.constant 0 : index
    %0 = vector.load %arg3[%c0, %c0_0, %c0_1] : memref<1x16x512xf32, #tpu.memory_space<vmem>>, vector<1x16x512xf32>
    %c0_2 = arith.constant 0 : index
    %c0_3 = arith.constant 0 : index
    %c0_4 = arith.constant 0 : index
    %1 = vector.load %arg4[%c0_2, %c0_3, %c0_4] : memref<1x19x512xf32, #tpu.memory_space<vmem>>, vector<1x16x512xf32>
    tpu.vector_store %arg4[%c0_2, %c0_3, %c0_4], %0 {strides = array<i32>} : memref<1x19x512xf32, #tpu.memory_space<vmem>>, vector<1x16x512xf32>,
    %c0_5 = arith.constant 0 : index
    %c0_6 = arith.constant 0 : index
    %c0_7 = arith.constant 0 : index
    %2 = vector.load %arg2[%c0_5, %c0_6, %c0_7] : memref<1x3x512xf32, #tpu.memory_space<vmem>>, vector<1x3x512xf32>
    %c0_8 = arith.constant 0 : index
    %c16 = arith.constant 16 : index
    %c0_9 = arith.constant 0 : index
    %3 = vector.load %arg4[%c0_8, %c16, %c0_9] : memref<1x19x512xf32, #tpu.memory_space<vmem>>, vector<1x3x512xf32>
    tpu.vector_store %arg4[%c0_8, %c16, %c0_9], %2 {strides = array<i32>} : memref<1x19x512xf32, #tpu.memory_space<vmem>>, vector<1x3x512xf32>,
    return
  }
  func.func @transform_0(%arg0: i32, %arg1: i32) -> (i32, i32, i32) {
    %c0_i32 = arith.constant 0 : i32
    %c0_i32_0 = arith.constant 0 : i32
    return %arg0, %c0_i32, %arg1 : i32, i32, i32
  }
  func.func @transform_1(%arg0: i32, %arg1: i32) -> (i32, i32, i32) {
    %c0_i32 = arith.constant 0 : i32
    %c0_i32_0 = arith.constant 0 : i32
    return %arg0, %c0_i32, %arg1 : i32, i32, i32
  }
  func.func @transform_2(%arg0: i32, %arg1: i32) -> (i32, i32, i32) {
    %c0_i32 = arith.constant 0 : i32
    %c0_i32_0 = arith.constant 0 : i32
    return %arg0, %c0_i32, %arg1 : i32, i32, i32
  }
}

</mosaic_0001>

<llo_original>
// kernel: tpu_custom_call.1
$region0: #{tpu_custom_call.1}
  #allocation0 [shape = 'u32[]', space=smem, size = 0x4, offset = 0x4, fixed_abs, tag = 'smem constant byte address 0x4 - core index']
  #allocation1 [shape = 'u32[144,128]{1,0:T(1,128)}', space=vmem, size = 0x12000, scoped, tag = 'internal scratch']
  %s0 = inlined_call_operand.vmem [shape: f32[2,3,512], index: 0, kind: input, shape index: {}]
  %s1 = inlined_call_operand.hbm [shape: f32[2,16,512], index: 1, kind: input, shape index: {}]
  %s2 = inlined_call_operand.vmem [shape: f32[2,19,512], index: 2, kind: output, shape index: {}]
  %s3 = sld [smem:[#allocation0]]
  $region45: #{tpu_custom_call.1} parent=0
    _
  %s5 = ssub.s32 1, %s3
  %s6 = scalar_select 0, %s5, %s3
  $region1: #{tpu_custom_call.1} parent=0
    #allocation2 [shape = 'u8[65536]{0}', space=vmem, size = 0x10000, scoped, tag = 'input window, operand 1']
    #allocation3 [shape = 's32[2]{0}', space=sflag, size = 0x8, scoped, tag = 'scoped memory for tpu_custom_call.1']
    %7 = vsyncpa [#allocation3], 0
    %s8 = scalar_lea.sflag [#allocation3], 1
    %9 = vsyncpa %s8, 0
    loop: start=0, step=1, limit=4
    $region2: #{tpu_custom_call.1} parent=1 // loop_pre_header
      _
    $region3: #{tpu_custom_call.1} parent=1 // loop_header
      %s11 = sphi 0, %s15
      %p12 = scmp.ge.s32.totalorder %s11, 4
      %s18 = sphi 0, %s30
      %s19 = sphi 0, %s26
      %s20 = sphi 0, %s18
      %s21 = sphi 0, %s19
      %s22 = sphi 0, %s20
      %s23 = sphi 0, %s21
      %s35 = sphi 0, %s37
      %s38 = sphi 0, %s35
      %s39 = sphi 0, %s38
      %s55 = sphi 0, %s39
      %s63 = sphi 0, %s65
      %s66 = sphi 0, %s63
      %s67 = sphi 0, %s66
      %s83 = sphi 0, %s67
      %s91 = sphi 0, %s93
      %s94 = sphi 0, %s91
      %s95 = sphi 0, %s94
      %s111 = sphi 0, %s95
    $region4: #{tpu_custom_call.1} parent=1 // loop_header_branch
      %14 = sbr.rel (%p12) target = $region8
    $region5: #{tpu_custom_call.1} parent=1 // loop_body
      %s16 = ssub.s32 %s11, 1
      %s17 = ssub.s32 %s11, 2
      %s24 = sadd.s32 1, %s19
      %p25 = scmp.ge.s32.totalorder %s24, 1
      %s26 = scalar_select %p25, 0, %s24
      %s27 = sadd.s32 1, %s18
      %s28 = scalar_select %p25, %s27, %s18
      %p29 = scmp.ge.s32.totalorder %s28, 2
      %s30 = scalar_select %p29, 0, %s28
      %s31 = ssub.s32 %s18, %s30
      %s32 = ssub.s32 %s19, %s26
      %s33 = sor.u32 %s31, %s32
      %p34 = scmp.eq.s32.totalorder %s33, 0
      %s36 = sadd.s32 %s35, 1
      %s37 = scalar_select %p34, %s35, %s36
      %p40 = pneg %p34
      %p41 = scmp.eq.s32.totalorder %s11, 1
      %p42 = por %p40, %p41
      %p43 = scmp.ne.s32.totalorder %s35, %s38
      %p44 = scmp.eq.s32.totalorder %s11, 0
      %p45 = por %p43, %p44
      %p46 = scmp.ne.s32.totalorder %s35, %s38
      %p47 = scmp.eq.s32.totalorder %s16, 1
      %p48 = por %p46, %p47
      %p49 = scmp.ne.s32.totalorder %s38, %s39
      %p50 = scmp.eq.s32.totalorder %s16, 0
      %p51 = por %p49, %p50
      %p52 = scmp.ne.s32.totalorder %s38, %s39
      %p53 = scmp.eq.s32.totalorder %s17, 1
      %p54 = por %p52, %p53
      %p56 = scmp.ne.s32.totalorder %s39, %s55
      %p57 = scmp.eq.s32.totalorder %s17, 0
      %p58 = por %p56, %p57
      %s59 = ssub.s32 %s18, %s30
      %s60 = ssub.s32 %s19, %s26
      %s61 = sor.u32 %s59, %s60
      %p62 = scmp.eq.s32.totalorder %s61, 0
      %s64 = sadd.s32 %s63, 1
      %s65 = scalar_select %p62, %s63, %s64
      %p68 = pneg %p62
      %p69 = scmp.eq.s32.totalorder %s11, 1
      %p70 = por %p68, %p69
      %p71 = scmp.ne.s32.totalorder %s63, %s66
      %p72 = scmp.eq.s32.totalorder %s11, 0
      %p73 = por %p71, %p72
      %p74 = scmp.ne.s32.totalorder %s63, %s66
      %p75 = scmp.eq.s32.totalorder %s16, 1
      %p76 = por %p74, %p75
      %p77 = scmp.ne.s32.totalorder %s66, %s67
      %p78 = scmp.eq.s32.totalorder %s16, 0
      %p79 = por %p77, %p78
      %p80 = scmp.ne.s32.totalorder %s66, %s67
      %p81 = scmp.eq.s32.totalorder %s17, 1
      %p82 = por %p80, %p81
      %p84 = scmp.ne.s32.totalorder %s67, %s83
      %p85 = scmp.eq.s32.totalorder %s17, 0
      %p86 = por %p84, %p85
      %s87 = ssub.s32 %s18, %s30
      %s88 = ssub.s32 %s19, %s26
      %s89 = sor.u32 %s87, %s88
      %p90 = scmp.eq.s32.totalorder %s89, 0
      %s92 = sadd.s32 %s91, 1
      %s93 = scalar_select %p90, %s91, %s92
      %p96 = pneg %p90
      %p97 = scmp.eq.s32.totalorder %s11, 1
      %p98 = por %p96, %p97
      %p99 = scmp.ne.s32.totalorder %s91, %s94
      %p100 = scmp.eq.s32.totalorder %s11, 0
      %p101 = por %p99, %p100
      %p102 = scmp.ne.s32.totalorder %s91, %s94
      %p103 = scmp.eq.s32.totalorder %s16, 1
      %p104 = por %p102, %p103
      %p105 = scmp.ne.s32.totalorder %s94, %s95
      %p106 = scmp.eq.s32.totalorder %s16, 0
      %p107 = por %p105, %p106
      %p108 = scmp.ne.s32.totalorder %s94, %s95
      %p109 = scmp.eq.s32.totalorder %s17, 1
      %p110 = por %p108, %p109
      %p112 = scmp.ne.s32.totalorder %s95, %s111
      %p113 = scmp.eq.s32.totalorder %s17, 0
      %p114 = por %p112, %p113
      %p115 = scmp.le.s32.totalorder 1, %s11
      %p116 = scmp.lt.s32.totalorder %s11, 3
      %p117 = pnand %p115, %p116
      %p118 = pneg %p117
      // Predicated region
      $region9: #{tpu_custom_call.1} parent=5 // pred_check
        _
      $region10: #{tpu_custom_call.1} parent=5 // pred_check_branch
        %120 = sbr.rel (%p117) target = $region12
      $region11: #{tpu_custom_call.1} parent=5 // pred_region
        %s121 = ssub.s32 %s11, 1
      $region12: #{tpu_custom_call.1} parent=5 // pred_fallthru
        _
      %p122 = scmp.lt.s32.totalorder %s11, 2
      // Predicated region
      $region13: #{tpu_custom_call.1} parent=5 // pred_check
        %p123 = pneg %p122
      $region14: #{tpu_custom_call.1} parent=5 // pred_check_branch
        %125 = sbr.rel (%p123) target = $region16
      $region15: #{tpu_custom_call.1} parent=5 // pred_region
        // Predicated region
        $region17: #{tpu_custom_call.1} parent=15 // pred_check
          %p126 = pneg %p45
        $region18: #{tpu_custom_call.1} parent=15 // pred_check_branch
          %128 = sbr.rel (%p126) target = $region20
        $region19: #{tpu_custom_call.1} parent=15 // pred_region
          %s129 = smul.u32 4, %s19
          %p130 = scmp.lt.s32.totalorder %s18, 1
          %s131 = scalar_select %p130, %s18, 1
          %p132 = scmp.lt.s32.totalorder %s129, 3
          %s133 = scalar_select %p132, %s129, 3
          %s134 = smul.addr %s131, 4
          %s135 = sadd.s32 %s133, %s134
          %s136 = smul.addr %s135, 4
          %s137 = scalar_lea.vmem %s0, %s136
          %s138 = smul.u32 4, %s19
        $region20: #{tpu_custom_call.1} parent=15 // pred_fallthru
          _
        // Predicated region
        $region21: #{tpu_custom_call.1} parent=15 // pred_check
          %p139 = pneg %p73
        $region22: #{tpu_custom_call.1} parent=15 // pred_check_branch
          %141 = sbr.rel (%p139) target = $region24
        $region23: #{tpu_custom_call.1} parent=15 // pred_region
          %s142 = sand.u32 %s63, 1
          %s143 = scalar_lea.sflag [#allocation3], %s142
          %s144 = sand.u32 %s63, 1
          %s145 = smul.addr %s144, 64
          %s146 = scalar_lea.vmem [#allocation2], %s145
          %s147 = smul.u32 4, %s19
          %s149 = ssub.s32 1024, 1024
          %150 = vsyncadd %s143, %s149
          %s151 = smul.addr %s18, 8
          %s152 = sadd.s32 %s147, %s151
          %s153 = smul.addr %s152, 128
          %s154 = scalar_lea.hbm %s1, %s153
          %s155 = sshll.u32 %s146, 4
          %s156 = int_to_ptr.vmem [resolvable:$true] %s155
          %161 = dma.hbm_to_vmem [thread:$0]  %s154, 1024, %s156, %s143, 512, 512, 32
        $region24: #{tpu_custom_call.1} parent=15 // pred_fallthru
          _
      $region16: #{tpu_custom_call.1} parent=5 // pred_fallthru
        _
      %p162 = scmp.le.s32.totalorder 1, %s11
      %p163 = scmp.lt.s32.totalorder %s11, 3
      %p164 = pnand %p162, %p163
      %p165 = pneg %p164
      // Predicated region
      $region25: #{tpu_custom_call.1} parent=5 // pred_check
        _
      $region26: #{tpu_custom_call.1} parent=5 // pred_check_branch
        %167 = sbr.rel (%p164) target = $region28
      $region27: #{tpu_custom_call.1} parent=5 // pred_region
        %s168 = ssub.s32 %s11, 1
        %s169 = sand.u32 %s66, 1
        %s170 = scalar_lea.sflag [#allocation3], %s169
        %s171 = sand.u32 %s66, 1
        %s172 = smul.addr %s171, 64
        %s173 = scalar_lea.vmem [#allocation2], %s172
        // Predicated region
        $region29: #{tpu_custom_call.1} parent=27 // pred_check
          %p174 = pneg %p79
        $region30: #{tpu_custom_call.1} parent=27 // pred_check_branch
          %176 = sbr.rel (%p174) target = $region32
        $region31: #{tpu_custom_call.1} parent=27 // pred_region
          %177 = dma.done %s170, 1024
        $region32: #{tpu_custom_call.1} parent=27 // pred_fallthru
          _
        %s178 = smul.u32 4, %s21
        %p179 = scmp.lt.s32.totalorder %s20, 1
        %s180 = scalar_select %p179, %s20, 1
        %p181 = scmp.lt.s32.totalorder %s178, 3
        %s182 = scalar_select %p181, %s178, 3
        %s183 = smul.addr %s180, 4
        %s184 = sadd.s32 %s182, %s183
        %s185 = smul.addr %s184, 4
        %s186 = scalar_lea.vmem %s0, %s185
        %p187 = pneg %p51
        %p188 = pneg %p48
        %s189 = sand.u32 %s66, 1
        %s190 = scalar_lea.sflag [#allocation3], %s189
        %s191 = sand.u32 %s66, 1
        %s192 = smul.addr %s191, 64
        %s193 = scalar_lea.vmem [#allocation2], %s192
        %p194 = pneg %p79
        %p195 = pneg %p76
        %p196 = pneg %p107
        %p197 = pneg %p104
        %s198 = smul.u32 4, %s21
        %p199 = scmp.lt.s32.totalorder %s20, 1
        %s200 = scalar_select %p199, %s20, 1
        %p201 = scmp.lt.s32.totalorder %s198, 3
        %s202 = scalar_select %p201, %s198, 3
        %s203 = smul.addr %s200, 12
        %s204 = sadd.s32 %s202, %s203
        %s205 = smul.addr %s204, 8
        %s206 = scalar_lea.vmem %s2, %s205
        %s207 = smul.u32 4, %s21
        %p208 = scmp.lt.s32.totalorder %s20, 1
        %s209 = scalar_select %p208, %s20, 1
        %p210 = scmp.lt.s32.totalorder %s207, 3
        %s211 = scalar_select %p210, %s207, 3
        %s212 = smul.addr %s209, 4
        %s213 = sadd.s32 %s211, %s212
        %s214 = smul.addr %s213, 4
        %s215 = scalar_lea.vmem %s0, %s214
        %s216 = smul.u32 4, %s21
        %s217 = smul.u32 4, %s21
        %s218 = smul.u32 4, %s21
        %p219 = scmp.lt.s32.totalorder %s20, 1
        %s220 = scalar_select %p219, %s20, 1
        %p221 = scmp.lt.s32.totalorder %s218, 3
        %s222 = scalar_select %p221, %s218, 3
        %s223 = smul.addr %s220, 12
        %s224 = sadd.s32 %s222, %s223
        %s225 = smul.addr %s224, 8
        %s226 = scalar_lea.vmem %s2, %s225
        %s227 = smul.u32 4, %s21
        %v228 = vld [vmem:[%s173] sm:$0xff]
        %v229 = vld [vmem:[%s173 + $0x8] sm:$0xff]
        %v230 = vld [vmem:[%s173 + $0x10] sm:$0xff]
        %v231 = vld [vmem:[%s173 + $0x18] sm:$0xff]
        %v232 = vld [vmem:[%s173 + $0x20] sm:$0xff]
        %v233 = vld [vmem:[%s173 + $0x28] sm:$0xff]
        %v234 = vld [vmem:[%s173 + $0x30] sm:$0xff]
        %v235 = vld [vmem:[%s173 + $0x38] sm:$0xff]
        %236 = vst [vmem:[%s226] sm:$0xff] %v228
        %237 = vst [vmem:[%s226 + $0x8] sm:$0xff] %v229
        %238 = vst [vmem:[%s226 + $0x10] sm:$0xff] %v230
        %239 = vst [vmem:[%s226 + $0x18] sm:$0xff] %v231
        %240 = vst [vmem:[%s226 + $0x20] sm:$0xff] %v232
        %241 = vst [vmem:[%s226 + $0x28] sm:$0xff] %v233
        %242 = vst [vmem:[%s226 + $0x30] sm:$0xff] %v234
        %243 = vst [vmem:[%s226 + $0x38] sm:$0xff] %v235
        %v244 = vld [vmem:[%s215] sm:$0x77]
        %v245 = vld [vmem:[%s215 + $0x8] sm:$0x77]
        %v248 = vcombine.high %v244, %v244
        %v249 = vcombine.high %v245, %v245
        %252 = vst [vmem:[%s226 + $0x40] sm:$0x7] %v244
        %253 = vst [vmem:[%s226 + $0x48] sm:$0x7] %v248
        %254 = vst [vmem:[%s226 + $0x50] sm:$0x7] %v245
        %255 = vst [vmem:[%s226 + $0x58] sm:$0x7] %v249
        %s256 = smul.u32 4, %s21
        %p257 = scmp.lt.s32.totalorder %s20, 1
        %s258 = scalar_select %p257, %s20, 1
        %p259 = scmp.lt.s32.totalorder %s256, 3
        %s260 = scalar_select %p259, %s256, 3
        %s261 = smul.addr %s258, 12
        %s262 = sadd.s32 %s260, %s261
        %s263 = smul.addr %s262, 8
        %s264 = scalar_lea.vmem %s2, %s263
        // Predicated region
        $region33: #{tpu_custom_call.1} parent=27 // pred_check
          %p265 = pneg %p104
        $region34: #{tpu_custom_call.1} parent=27 // pred_check_branch
          %267 = sbr.rel (%p265) target = $region36
        $region35: #{tpu_custom_call.1} parent=27 // pred_region
          %s268 = smul.u32 4, %s21
        $region36: #{tpu_custom_call.1} parent=27 // pred_fallthru
          _
      $region28: #{tpu_custom_call.1} parent=5 // pred_fallthru
        _
      %p269 = scmp.le.s32.totalorder 2, %s11
      // Predicated region
      $region37: #{tpu_custom_call.1} parent=5 // pred_check
        %p270 = pneg %p269
      $region38: #{tpu_custom_call.1} parent=5 // pred_check_branch
        %272 = sbr.rel (%p270) target = $region40
      $region39: #{tpu_custom_call.1} parent=5 // pred_region
        %s273 = ssub.s32 %s11, 2
        // Predicated region
        $region41: #{tpu_custom_call.1} parent=39 // pred_check
          %p274 = pneg %p110
        $region42: #{tpu_custom_call.1} parent=39 // pred_check_branch
          %276 = sbr.rel (%p274) target = $region44
        $region43: #{tpu_custom_call.1} parent=39 // pred_region
          %s277 = smul.u32 4, %s23
          %p278 = scmp.lt.s32.totalorder %s22, 1
          %s279 = scalar_select %p278, %s22, 1
          %p280 = scmp.lt.s32.totalorder %s277, 3
          %s281 = scalar_select %p280, %s277, 3
          %s282 = smul.addr %s279, 12
          %s283 = sadd.s32 %s281, %s282
          %s284 = smul.addr %s283, 8
          %s285 = scalar_lea.vmem %s2, %s284
        $region44: #{tpu_custom_call.1} parent=39 // pred_fallthru
          _
      $region40: #{tpu_custom_call.1} parent=5 // pred_fallthru
        _
    $region6: #{tpu_custom_call.1} parent=1 // loop_footer
      %s15 = sadd.s32 1, %s11
    $region7: #{tpu_custom_call.1} parent=1 // loop_footer_branch
      %10 = sbr.rel target = $region3
    $region8: #{tpu_custom_call.1} parent=1 // loop_exit
      _
    %286 = vsyncpa [#allocation3], 1
    %s287 = scalar_lea.sflag [#allocation3], 1
    %288 = vsyncpa %s287, 1

</llo_original>
